<compile_context>
chip_gen: v7x
topology: tpu7x:2x2x1
jax: 0.10.0
libtpu: 0.0.40
codegen_flags: <defaults>
</compile_context>

<pallas_src>
import functools

import jax
import jax.numpy as jnp
from jax.experimental import pallas as pl
from jax.experimental.pallas import tpu as pltpu

LSTM = "LSTM"
GRU = "GRU"


def _bahdanau_init_kernel(h_n_ref, w_ref, b_ref, h_ref, *, n_valid):
    """hidden[l] = tanh(h_n[2l+1] @ W^T + b) for l < n_valid, zeros after."""
    L, B, D = h_ref.shape
    w = w_ref[...]                     # [E, D] f32, loaded once, VMEM resident
    b = b_ref[...]                     # [1, D] f32
    # Backward-direction encoder states live at rows 1, 3, 5, ... of h_n.
    # n_valid is a Python int -> this unrolls into n_valid back-to-back MXU
    # matmuls inside one kernel invocation (no per-layer grid-step overhead).
    for l in range(n_valid):
        x = h_n_ref[2 * l + 1]                                     # [B, E] f32
        y = jnp.dot(x, w, preferred_element_type=jnp.float32)      # [B, D] f32
        h_ref[l] = jnp.tanh(y + b).astype(h_ref.dtype)
    # Decoder deeper than the encoder produced states for -> zero-pad the tail.
    if n_valid < L:
        h_ref[pl.ds(n_valid, L - n_valid)] = jnp.zeros(
            (L - n_valid, B, D), h_ref.dtype)


def bahdanau_init_pallas(h_n, w_t, b, *, decoder_num_layers, rnn_cell_type):
    """h_n: [S, B, E] f32, w_t: [E, D] f32 (transposed nn.Linear weight), b: [D] f32."""
    assert rnn_cell_type in (LSTM, GRU)
    S, B, E = h_n.shape
    D = w_t.shape[1]
    L = decoder_num_layers
    n_valid = min(S // 2, L)           # backward states at rows 1, 3, 5, ...
    b2 = b.reshape(1, D).astype(jnp.float32)

    cost = pl.CostEstimate(
        flops=2 * n_valid * B * E * D,
        transcendentals=n_valid * B * D,
        bytes_accessed=4 * (S * B * E + E * D + D + L * B * D),
    )

    hidden = pl.pallas_call(
        functools.partial(_bahdanau_init_kernel, n_valid=n_valid),
        out_shape=jax.ShapeDtypeStruct((L, B, D), jnp.float32),
        grid=(1,),
        in_specs=[
            pl.BlockSpec((S, B, E), lambda i: (0, 0, 0)),   # full h_n, one block
            pl.BlockSpec((E, D), lambda i: (0, 0)),         # weight, one block
            pl.BlockSpec((1, D), lambda i: (0, 0)),         # bias
        ],
        out_specs=pl.BlockSpec((L, B, D), lambda i: (0, 0, 0)),
        compiler_params=pltpu.CompilerParams(
            dimension_semantics=("arbitrary",)),
        cost_estimate=cost,
    )(h_n, w_t, b2)

    if rnn_cell_type == GRU:
        return hidden
    # LSTM initial cell state is all zeros: cheaper to materialize as an XLA
    # constant than to add a second pipelined output stream to the kernel.
    return hidden, jnp.zeros_like(hidden)


class BahdanauInitPallas:
    """JAX/Pallas port of BahdanauInit (Linear + tanh on backward encoder states)."""

    def __init__(self, encoder_hidden_size, decoder_num_layers,
                 decoder_hidden_size, rnn_cell_type, key):
        assert rnn_cell_type in (LSTM, GRU)
        self.decoder_num_layers = decoder_num_layers
        self.decoder_hidden_size = decoder_hidden_size
        self.rnn_cell_type = rnn_cell_type
        # nn.Linear-style init: uniform(-k, k), k = 1/sqrt(in_features).
        k = 1.0 / (encoder_hidden_size ** 0.5)
        kw, kb = jax.random.split(key)
        # PyTorch Linear weight is (out, in); store its transpose for x @ W^T.
        self.w_t = jax.random.uniform(
            kw, (encoder_hidden_size, decoder_hidden_size),
            minval=-k, maxval=k, dtype=jnp.float32)
        self.b = jax.random.uniform(
            kb, (decoder_hidden_size,), minval=-k, maxval=k, dtype=jnp.float32)

    def __call__(self, h_n):
        return bahdanau_init_pallas(
            h_n, self.w_t, self.b,
            decoder_num_layers=self.decoder_num_layers,
            rnn_cell_type=self.rnn_cell_type)


if __name__ == "__main__":
    key = jax.random.PRNGKey(0)
    k_param, k_input = jax.random.split(key)

    encoder_hidden_size = 32
    decoder_hidden_size = 32
    encoder_num_layers = 2          # bidirectional encoder -> 4 hidden states
    num_directions = 2
    batch_size = 2

    h_n = jax.random.normal(
        k_input,
        (encoder_num_layers * num_directions, batch_size, encoder_hidden_size),
        dtype=jnp.float32)

    def reference(module, h):
        backward_h = h[1::2][: module.decoder_num_layers]
        hid = jnp.tanh(backward_h @ module.w_t + module.b)
        n = hid.shape[0]
        if n < module.decoder_num_layers:
            pad = jnp.zeros((module.decoder_num_layers - n, h.shape[1],
                             module.decoder_hidden_size), jnp.float32)
            hid = jnp.concatenate([hid, pad], axis=0)
        return hid

    # LSTM path: decoder has MORE layers than backward states -> zero padding.
    decoder_num_layers = 3
    lstm_mod = BahdanauInitPallas(encoder_hidden_size, decoder_num_layers,
                                  decoder_hidden_size, LSTM, k_param)
    hidden, cell = lstm_mod(h_n)
    jax.block_until_ready((hidden, cell))
    ref_h = reference(lstm_mod, h_n)
    assert hidden.shape == (decoder_num_layers, batch_size, decoder_hidden_size)
    assert cell.shape == (decoder_num_layers, batch_size, decoder_hidden_size)
    # f32 operands on both sides; tolerance covers MXU f32-pass vs XLA default
    # matmul precision differences.
    assert jnp.allclose(hidden, ref_h, atol=1e-2), "LSTM hidden mismatch"
    assert jnp.all(hidden[2] == 0.0), "padded layers must be exactly zero"
    assert jnp.all(cell == 0.0), "cell state must be zero"

    # GRU path: decoder has FEWER layers -> surplus layers never computed.
    gru_mod = BahdanauInitPallas(encoder_hidden_size, 1,
                                 decoder_hidden_size, GRU, k_param)
    hidden_g = gru_mod(h_n)
    jax.block_until_ready(hidden_g)
    ref_g = reference(gru_mod, h_n)
    assert hidden_g.shape == (1, batch_size, decoder_hidden_size)
    assert jnp.allclose(hidden_g, ref_g, atol=1e-2), "GRU hidden mismatch"

    print("KERNEL_OK")
</pallas_src>

<mosaic_0001>
module attributes {stable_mosaic.version = 11 : i64} {
  func.func @_bahdanau_init_kernel(%arg0: i32, %arg1: memref<4x2x32xf32, #tpu.memory_space<vmem>>, %arg2: memref<32x32xf32, #tpu.memory_space<vmem>>, %arg3: memref<1x32xf32, #tpu.memory_space<vmem>>, %arg4: memref<3x2x32xf32, #tpu.memory_space<vmem>>) attributes {dimension_semantics = [#tpu.dimension_semantics<arbitrary>], iteration_bounds = array<i64: 1>, scalar_prefetch = 0 : i64, scratch_operands = 0 : i64, tpu.core_type = #tpu.core_type<tc>, window_params = [{pipeline_mode = #tpu.pipeline_mode<synchronous>, transform_indices = @transform_0, window_bounds = array<i64: 4, 2, 32>}, {pipeline_mode = #tpu.pipeline_mode<synchronous>, transform_indices = @transform_1, window_bounds = array<i64: 32, 32>}, {pipeline_mode = #tpu.pipeline_mode<synchronous>, transform_indices = @transform_2, window_bounds = array<i64: 1, 32>}, {pipeline_mode = #tpu.pipeline_mode<synchronous>, transform_indices = @transform_3, window_bounds = array<i64: 3, 2, 32>}]} {
    %c0 = arith.constant 0 : index
    %c0_0 = arith.constant 0 : index
    %0 = vector.load %arg2[%c0, %c0_0] : memref<32x32xf32, #tpu.memory_space<vmem>>, vector<32x32xf32>
    %c0_1 = arith.constant 0 : index
    %c0_2 = arith.constant 0 : index
    %1 = vector.load %arg3[%c0_1, %c0_2] : memref<1x32xf32, #tpu.memory_space<vmem>>, vector<1x32xf32>
    %c1 = arith.constant 1 : index
    %c0_3 = arith.constant 0 : index
    %c0_4 = arith.constant 0 : index
    %2 = vector.load %arg1[%c1, %c0_3, %c0_4] : memref<4x2x32xf32, #tpu.memory_space<vmem>>, vector<1x2x32xf32>
    %3 = vector.shape_cast %2 : vector<1x2x32xf32> to vector<2x32xf32>
    %cst = arith.constant dense<0.000000e+00> : vector<2x32xf32>
    %4 = tpu.matmul %3, %0, %cst {dimension_numbers = #tpu.dot_dimension_numbers<[1], [0], [0], [1], [0, 0, 1, 1], [], []>} : vector<2x32xf32>, vector<32x32xf32>, vector<2x32xf32> -> vector<2x32xf32>
    %5 = vector.broadcast %1 : vector<1x32xf32> to vector<2x32xf32>
    %6 = arith.addf %4, %5 : vector<2x32xf32>
    %7 = math.tanh %6 : vector<2x32xf32>
    %c0_5 = arith.constant 0 : index
    %c0_6 = arith.constant 0 : index
    %c0_7 = arith.constant 0 : index
    %8 = vector.load %arg4[%c0_5, %c0_6, %c0_7] : memref<3x2x32xf32, #tpu.memory_space<vmem>>, vector<1x2x32xf32>
    %9 = vector.shape_cast %8 : vector<1x2x32xf32> to vector<2x32xf32>
    %10 = vector.shape_cast %7 : vector<2x32xf32> to vector<1x2x32xf32>
    tpu.vector_store %arg4[%c0_5, %c0_6, %c0_7], %10 {strides = array<i32>} : memref<3x2x32xf32, #tpu.memory_space<vmem>>, vector<1x2x32xf32>,
    %c3 = arith.constant 3 : index
    %c0_8 = arith.constant 0 : index
    %c0_9 = arith.constant 0 : index
    %11 = vector.load %arg1[%c3, %c0_8, %c0_9] : memref<4x2x32xf32, #tpu.memory_space<vmem>>, vector<1x2x32xf32>
    %12 = vector.shape_cast %11 : vector<1x2x32xf32> to vector<2x32xf32>
    %cst_10 = arith.constant dense<0.000000e+00> : vector<2x32xf32>
    %13 = tpu.matmul %12, %0, %cst_10 {dimension_numbers = #tpu.dot_dimension_numbers<[1], [0], [0], [1], [0, 0, 1, 1], [], []>} : vector<2x32xf32>, vector<32x32xf32>, vector<2x32xf32> -> vector<2x32xf32>
    %14 = vector.broadcast %1 : vector<1x32xf32> to vector<2x32xf32>
    %15 = arith.addf %13, %14 : vector<2x32xf32>
    %16 = math.tanh %15 : vector<2x32xf32>
    %c1_11 = arith.constant 1 : index
    %c0_12 = arith.constant 0 : index
    %c0_13 = arith.constant 0 : index
    %17 = vector.load %arg4[%c1_11, %c0_12, %c0_13] : memref<3x2x32xf32, #tpu.memory_space<vmem>>, vector<1x2x32xf32>
    %18 = vector.shape_cast %17 : vector<1x2x32xf32> to vector<2x32xf32>
    %19 = vector.shape_cast %16 : vector<2x32xf32> to vector<1x2x32xf32>
    tpu.vector_store %arg4[%c1_11, %c0_12, %c0_13], %19 {strides = array<i32>} : memref<3x2x32xf32, #tpu.memory_space<vmem>>, vector<1x2x32xf32>,
    %cst_14 = arith.constant 0.000000e+00 : f32
    %20 = vector.broadcast %cst_14 : f32 to vector<1x2x32xf32>
    %c2 = arith.constant 2 : index
    %c0_15 = arith.constant 0 : index
    %c0_16 = arith.constant 0 : index
    %21 = vector.load %arg4[%c2, %c0_15, %c0_16] : memref<3x2x32xf32, #tpu.memory_space<vmem>>, vector<1x2x32xf32>
    tpu.vector_store %arg4[%c2, %c0_15, %c0_16], %20 {strides = array<i32>} : memref<3x2x32xf32, #tpu.memory_space<vmem>>, vector<1x2x32xf32>,
    return
  }
  func.func @transform_0(%arg0: i32) -> (i32, i32, i32) {
    %c0_i32 = arith.constant 0 : i32
    %c0_i32_0 = arith.constant 0 : i32
    %c0_i32_1 = arith.constant 0 : i32
    %c0_i32_2 = arith.constant 0 : i32
    return %c0_i32, %c0_i32_0, %c0_i32_1 : i32, i32, i32
  }
  func.func @transform_1(%arg0: i32) -> (i32, i32) {
    %c0_i32 = arith.constant 0 : i32
    %c0_i32_0 = arith.constant 0 : i32
    %c0_i32_1 = arith.constant 0 : i32
    return %c0_i32, %c0_i32_0 : i32, i32
  }
  func.func @transform_2(%arg0: i32) -> (i32, i32) {
    %c0_i32 = arith.constant 0 : i32
    %c0_i32_0 = arith.constant 0 : i32
    %c0_i32_1 = arith.constant 0 : i32
    return %c0_i32, %c0_i32_0 : i32, i32
  }
  func.func @transform_3(%arg0: i32) -> (i32, i32, i32) {
    %c0_i32 = arith.constant 0 : i32
    %c0_i32_0 = arith.constant 0 : i32
    %c0_i32_1 = arith.constant 0 : i32
    %c0_i32_2 = arith.constant 0 : i32
    return %c0_i32, %c0_i32_0, %c0_i32_1 : i32, i32, i32
  }
}

</mosaic_0001>

<llo_original>
// kernel: tpu_custom_call.1
$region0: #{tpu_custom_call.1}
  #allocation0 [shape = 'u32[]', space=smem, size = 0x4, offset = 0x4, fixed_abs, tag = 'smem constant byte address 0x4 - core index']
  #allocation1 [shape = 'u32[144,128]{1,0:T(1,128)}', space=vmem, size = 0x12000, scoped, tag = 'internal scratch']
  %s0 = inlined_call_operand.hbm [shape: f32[4,2,32], index: 0, kind: input, shape index: {}]
  %s1 = inlined_call_operand.hbm [shape: f32[32,32], index: 1, kind: input, shape index: {}]
  %s2 = inlined_call_operand.vmem [shape: f32[1,32], index: 2, kind: input, shape index: {}]
  %s3 = inlined_call_operand.hbm [shape: f32[3,2,32], index: 3, kind: output, shape index: {}]
  %s4 = sld [smem:[#allocation0]]
  $region30: #{tpu_custom_call.1} parent=0
    _
  %s6 = ssub.s32 1, %s4
  %s7 = scalar_select 0, %s6, %s4
  $region1: #{tpu_custom_call.1} parent=0
    #allocation2 [shape = 'u8[4096]{0}', space=vmem, size = 0x1000, scoped, tag = 'input window, operand 0, single buffered']
    #allocation3 [shape = 's32[1]{0}', space=sflag, size = 0x4, scoped, tag = 'scoped memory for tpu_custom_call.1']
    #allocation4 [shape = 's32[1]{0}', space=sflag, size = 0x4, scoped, tag = 'scoped memory for tpu_custom_call.1']
    #allocation5 [shape = 'u8[16384]{0}', space=vmem, size = 0x4000, scoped, tag = 'input window, operand 1, single buffered']
    #allocation6 [shape = 's32[1]{0}', space=sflag, size = 0x4, scoped, tag = 'scoped memory for tpu_custom_call.1']
    #allocation7 [shape = 'u8[3072]{0}', space=vmem, size = 0xc00, scoped, tag = 'output window, operand 0, single buffered']
    %8 = vsyncpa [#allocation3], 0
    %9 = vsyncpa [#allocation6], 0
    %10 = vsyncpa [#allocation4], 0
    // Predicated region
    $region2: #{tpu_custom_call.1} parent=1 // pred_check
      _
    $region3: #{tpu_custom_call.1} parent=1 // pred_check_branch
      %12 = sbr.rel (0) target = $region5
    $region4: #{tpu_custom_call.1} parent=1 // pred_region
      %s14 = ssub.s32 128, 128
      %15 = vsyncadd [#allocation3], %s14
      %s16 = sshll.u32 [#allocation2], 4
      %s17 = int_to_ptr.vmem [resolvable:$true] %s16
      %22 = dma.hbm_to_vmem [thread:$0]  %s0, 128, %s17, [#allocation3], 32, 32, 2
    $region5: #{tpu_custom_call.1} parent=1 // pred_fallthru
      _
    // Predicated region
    $region6: #{tpu_custom_call.1} parent=1 // pred_check
      _
    $region7: #{tpu_custom_call.1} parent=1 // pred_check_branch
      %24 = sbr.rel (0) target = $region9
    $region8: #{tpu_custom_call.1} parent=1 // pred_region
      %s26 = ssub.s32 512, 512
      %27 = vsyncadd [#allocation6], %s26
      %s28 = sshll.u32 [#allocation5], 4
      %s29 = int_to_ptr.vmem [resolvable:$true] %s28
      %34 = dma.hbm_to_vmem [thread:$0]  %s1, 512, %s29, [#allocation6], 128, 128, 8
    $region9: #{tpu_custom_call.1} parent=1 // pred_fallthru
      _
    // Predicated region
    $region10: #{tpu_custom_call.1} parent=1 // pred_check
      _
    $region11: #{tpu_custom_call.1} parent=1 // pred_check_branch
      %36 = sbr.rel (0) target = $region13
    $region12: #{tpu_custom_call.1} parent=1 // pred_region
      _
    $region13: #{tpu_custom_call.1} parent=1 // pred_fallthru
      _
    // Predicated region
    $region14: #{tpu_custom_call.1} parent=1 // pred_check
      _
    $region15: #{tpu_custom_call.1} parent=1 // pred_check_branch
      %38 = sbr.rel (0) target = $region17
    $region16: #{tpu_custom_call.1} parent=1 // pred_region
      %39 = dma.done [#allocation3], 128
    $region17: #{tpu_custom_call.1} parent=1 // pred_fallthru
      _
    // Predicated region
    $region18: #{tpu_custom_call.1} parent=1 // pred_check
      _
    $region19: #{tpu_custom_call.1} parent=1 // pred_check_branch
      %41 = sbr.rel (0) target = $region21
    $region20: #{tpu_custom_call.1} parent=1 // pred_region
      %42 = dma.done [#allocation6], 512
    $region21: #{tpu_custom_call.1} parent=1 // pred_fallthru
      _
    %v43 = vld [vmem:[#allocation5] sm:$0xff]
    %v44 = vld [vmem:[#allocation5 + $0x8] sm:$0xff]
    %v45 = vld [vmem:[#allocation5 + $0x10] sm:$0xff]
    %v46 = vld [vmem:[#allocation5 + $0x18] sm:$0xff]
    %v47 = vld [vmem:[%s2] sm:$0x1]
    %s48 = scalar_lea.vmem [#allocation2], 2
    %v49 = vld [vmem:[%s48] sm:$0x3]
    %v51 = vlaneseq
    %v52 = vshrl.u32 %v51, 7
    %v53 = vsub.s32 0, %v52
    %v54 = vrot.slane %v47, %v53
    %vm56 = vcmask 261120
    %v58 = vsel %vm56, %v49, 0
    %60 = vmatprep.subr.mxu0 0.0
    %61 = vmatpush1.msra.mxu0 %v43
    %62 = vmatprep.subr.mxu0 0.0
    %63 = vmatpush1.msra.mxu0 %v44
    %64 = vmatprep.subr.mxu0 0.0
    %65 = vmatpush1.msra.mxu0 %v45
    %66 = vmatprep.subr.mxu0 0.0
    %67 = vmatpush1.msra.mxu0 %v46
    %68 = vmatprep.subr.mxu0 0.0
    %69 = vmatpush1.msra.mxu0 0.0
    %70 = vmatprep.subr.mxu0 0.0
    %71 = vmatpush1.msra.mxu0 0.0
    %72 = vmatprep.subr.mxu0 0.0
    %73 = vmatpush1.msra.mxu0 0.0
    %74 = vmatprep.subr.mxu0 0.0
    %75 = vmatpush1.msra.mxu0 0.0
    %76 = vmatprep.subr.mxu0 0.0
    %77 = vmatpush1.msra.mxu0 0.0
    %78 = vmatprep.subr.mxu0 0.0
    %79 = vmatpush1.msra.mxu0 0.0
    %80 = vmatprep.subr.mxu0 0.0
    %81 = vmatpush1.msra.mxu0 0.0
    %82 = vmatprep.subr.mxu0 0.0
    %83 = vmatpush1.msra.mxu0 0.0
    %84 = vmatprep.subr.mxu0 0.0
    %85 = vmatpush1.msra.mxu0 0.0
    %86 = vmatprep.subr.mxu0 0.0
    %87 = vmatpush1.msra.mxu0 0.0
    %88 = vmatprep.subr.mxu0 0.0
    %89 = vmatpush1.msra.mxu0 0.0
    %90 = vmatprep.subr.mxu0 0.0
    %91 = vmatpush1.msra.mxu0 0.0
    %92 = vmatprep.subr.mxu0 0.0
    %93 = vmatpush1.msra.mxu0 0.0
    %94 = vmatprep.subr.mxu0 0.0
    %95 = vmatpush1.msra.mxu0 0.0
    %96 = vmatprep.subr.mxu0 0.0
    %97 = vmatpush1.msra.mxu0 0.0
    %98 = vmatprep.subr.mxu0 0.0
    %99 = vmatpush1.msra.mxu0 0.0
    %100 = vmatprep.subr.mxu0 0.0
    %101 = vmatpush1.msra.mxu0 0.0
    %102 = vmatprep.subr.mxu0 0.0
    %103 = vmatpush1.msra.mxu0 0.0
    %104 = vmatprep.subr.mxu0 0.0
    %105 = vmatpush1.msra.mxu0 0.0
    %106 = vmatprep.subr.mxu0 0.0
    %107 = vmatpush1.msra.mxu0 0.0
    %108 = vmatprep.subr.mxu0 0.0
    %109 = vmatpush1.msra.mxu0 0.0
    %110 = vmatprep.subr.mxu0 0.0
    %111 = vmatpush1.msra.mxu0 0.0
    %112 = vmatprep.subr.mxu0 0.0
    %113 = vmatpush1.msra.mxu0 0.0
    %114 = vmatprep.subr.mxu0 0.0
    %115 = vmatpush1.msra.mxu0 0.0
    %116 = vmatprep.subr.mxu0 0.0
    %117 = vmatpush1.msra.mxu0 0.0
    %118 = vmatprep.subr.mxu0 0.0
    %119 = vmatpush1.msra.mxu0 0.0
    %120 = vmatprep.subr.mxu0 0.0
    %121 = vmatpush1.msra.mxu0 0.0
    %122 = vmatprep.subr.mxu0 0.0
    %123 = vmatpush1.msra.mxu0 0.0
    %124 = vmatprep.mubr.f32.mxu0 0.0
    %125 = vmatmul.mubr.f32.gmra.mrb[0].mxu0 %v58
    %v126 = vpop.f32.mrb[0].mxu0
    %v127 = vadd.f32 %v54, %v126
    %v128 = vpop.f32.mrb[0].mxu0
    %129 = vdwg.mxu0
    %v130 = vtanh.pop %v127
    %vm131 = vcmask 254976
    %132 = vst.msk [vmem:[#allocation7] sm:$0x3] %vm131, %v130
    %s133 = scalar_lea.vmem [#allocation2], 6
    %v134 = vld [vmem:[%s133] sm:$0x3]
    %v136 = vsel %vm56, %v134, 0
    %138 = vmatprep.subr.mxu0 0.0
    %139 = vmatpush1.msra.mxu0 %v43
    %140 = vmatprep.subr.mxu0 0.0
    %141 = vmatpush1.msra.mxu0 %v44
    %142 = vmatprep.subr.mxu0 0.0
    %143 = vmatpush1.msra.mxu0 %v45
    %144 = vmatprep.subr.mxu0 0.0
    %145 = vmatpush1.msra.mxu0 %v46
    %146 = vmatprep.subr.mxu0 0.0
    %147 = vmatpush1.msra.mxu0 0.0
    %148 = vmatprep.subr.mxu0 0.0
    %149 = vmatpush1.msra.mxu0 0.0
    %150 = vmatprep.subr.mxu0 0.0
    %151 = vmatpush1.msra.mxu0 0.0
    %152 = vmatprep.subr.mxu0 0.0
    %153 = vmatpush1.msra.mxu0 0.0
    %154 = vmatprep.subr.mxu0 0.0
    %155 = vmatpush1.msra.mxu0 0.0
    %156 = vmatprep.subr.mxu0 0.0
    %157 = vmatpush1.msra.mxu0 0.0
    %158 = vmatprep.subr.mxu0 0.0
    %159 = vmatpush1.msra.mxu0 0.0
    %160 = vmatprep.subr.mxu0 0.0
    %161 = vmatpush1.msra.mxu0 0.0
    %162 = vmatprep.subr.mxu0 0.0
    %163 = vmatpush1.msra.mxu0 0.0
    %164 = vmatprep.subr.mxu0 0.0
    %165 = vmatpush1.msra.mxu0 0.0
    %166 = vmatprep.subr.mxu0 0.0
    %167 = vmatpush1.msra.mxu0 0.0
    %168 = vmatprep.subr.mxu0 0.0
    %169 = vmatpush1.msra.mxu0 0.0
    %170 = vmatprep.subr.mxu0 0.0
    %171 = vmatpush1.msra.mxu0 0.0
    %172 = vmatprep.subr.mxu0 0.0
    %173 = vmatpush1.msra.mxu0 0.0
    %174 = vmatprep.subr.mxu0 0.0
    %175 = vmatpush1.msra.mxu0 0.0
    %176 = vmatprep.subr.mxu0 0.0
    %177 = vmatpush1.msra.mxu0 0.0
    %178 = vmatprep.subr.mxu0 0.0
    %179 = vmatpush1.msra.mxu0 0.0
    %180 = vmatprep.subr.mxu0 0.0
    %181 = vmatpush1.msra.mxu0 0.0
    %182 = vmatprep.subr.mxu0 0.0
    %183 = vmatpush1.msra.mxu0 0.0
    %184 = vmatprep.subr.mxu0 0.0
    %185 = vmatpush1.msra.mxu0 0.0
    %186 = vmatprep.subr.mxu0 0.0
    %187 = vmatpush1.msra.mxu0 0.0
    %188 = vmatprep.subr.mxu0 0.0
    %189 = vmatpush1.msra.mxu0 0.0
    %190 = vmatprep.subr.mxu0 0.0
    %191 = vmatpush1.msra.mxu0 0.0
    %192 = vmatprep.subr.mxu0 0.0
    %193 = vmatpush1.msra.mxu0 0.0
    %194 = vmatprep.subr.mxu0 0.0
    %195 = vmatpush1.msra.mxu0 0.0
    %196 = vmatprep.subr.mxu0 0.0
    %197 = vmatpush1.msra.mxu0 0.0
    %198 = vmatprep.subr.mxu0 0.0
    %199 = vmatpush1.msra.mxu0 0.0
    %200 = vmatprep.subr.mxu0 0.0
    %201 = vmatpush1.msra.mxu0 0.0
    %202 = vmatprep.mubr.f32.mxu0 0.0
    %203 = vmatmul.mubr.f32.gmra.mrb[0].mxu0 %v136
    %v204 = vpop.f32.mrb[0].mxu0
    %v205 = vadd.f32 %v54, %v204
    %v206 = vpop.f32.mrb[0].mxu0
    %207 = vdwg.mxu0
    %v208 = vtanh.pop %v205
    %s209 = scalar_lea.vmem [#allocation7], 2
    %210 = vst.msk [vmem:[%s209] sm:$0x3] %vm131, %v208
    %s211 = scalar_lea.vmem [#allocation7], 4
    %212 = vst.msk [vmem:[%s211] sm:$0x3] %vm131, 0.0
    // Predicated region
    $region22: #{tpu_custom_call.1} parent=1 // pred_check
      _
    $region23: #{tpu_custom_call.1} parent=1 // pred_check_branch
      %214 = sbr.rel (0) target = $region25
    $region24: #{tpu_custom_call.1} parent=1 // pred_region
      %s216 = ssub.s32 96, 96
      %217 = vsyncadd [#allocation4], %s216
      %s218 = sshll.u32 [#allocation7], 4
      %s219 = int_to_ptr.vmem [resolvable:$true] %s218
      %224 = dma.vmem_to_hbm [thread:$0]  %s219, 96, %s3, [#allocation4], 32, 32, 2
    $region25: #{tpu_custom_call.1} parent=1 // pred_fallthru
      _
    // Predicated region
    $region26: #{tpu_custom_call.1} parent=1 // pred_check
      _
    $region27: #{tpu_custom_call.1} parent=1 // pred_check_branch
      %226 = sbr.rel (0) target = $region29
    $region28: #{tpu_custom_call.1} parent=1 // pred_region
      %227 = dma.done [#allocation4], 96
    $region29: #{tpu_custom_call.1} parent=1 // pred_fallthru
      _
    %228 = vsyncpa [#allocation3], 1
    %229 = vsyncpa [#allocation6], 1
    %230 = vsyncpa [#allocation4], 1

</llo_original>
